<compile_context>
chip_gen: v5e
topology: v5e:2x2
jax: 0.10.0
libtpu: 0.0.40
codegen_flags: <defaults>
</compile_context>

<pallas_src>
import functools

import jax
import jax.numpy as jnp
from jax.experimental import pallas as pl
from jax.experimental.pallas import tpu as pltpu

CIN = 2
EPS = 1e-5  # torch.nn.BatchNorm2d default


def _unit_kernel(x_ref, w1_ref, w2_ref, bn_ref, out_ref, *, n, h, w):
    """Processes one batch group. x_ref: (CIN*n, h*w), rows [0,n)=ch0, [n,2n)=ch1."""
    hw = h * w
    assert (w & (w - 1)) == 0, "W must be a power of two for the shift/mask trick"
    w_shift = w.bit_length() - 1
    f32 = jnp.float32

    # ---- one-time boundary-validity masks (float, multiplicative) ----------
    pos = jax.lax.broadcasted_iota(jnp.int32, (1, hw), 1)
    hh = pos >> w_shift          # row index    (pos // w)
    ww = pos & (w - 1)           # column index (pos %  w)
    m_top = (hh >= 1).astype(f32)        # tap valid for dh = -1
    m_bot = (hh <= h - 2).astype(f32)    # tap valid for dh = +1
    m_lft = (ww >= 1).astype(f32)        # tap valid for dw = -1
    m_rgt = (ww <= w - 2).astype(f32)    # tap valid for dw = +1
    row_mask = {-1: m_top, 0: None, 1: m_bot}
    col_mask = {-1: m_lft, 0: None, 1: m_rgt}
    masks = {}
    for dh in (-1, 0, 1):
        for dw in (-1, 0, 1):
            rm, cm = row_mask[dh], col_mask[dw]
            if rm is None:
                masks[(dh, dw)] = cm
            elif cm is None:
                masks[(dh, dw)] = rm
            else:
                masks[(dh, dw)] = rm * cm          # corner taps
    # -------------------------------------------------------------------------

    def taps(img):
        """Yield (tap_index, shifted-and-masked img) for the 9 conv taps."""
        for kh in range(3):
            for kw in range(3):
                dh, dw = kh - 1, kw - 1
                s = dh * w + dw
                t = img if s == 0 else pltpu.roll(img, (-s) % hw, axis=1)
                m = masks[(dh, dw)]
                if m is not None:
                    t = t * m                       # multiplicative mask, no select
                yield kh * 3 + kw, t

    def bn_relu(a, gamma, beta):
        # Training-mode BatchNorm2d(1): biased batch stats over (N, H, W).
        # Two-pass variance (numerically safe); reductions stay vreg-resident.
        inv_cnt = 1.0 / (a.shape[0] * a.shape[1])
        mean = jnp.sum(jnp.sum(a, axis=1, keepdims=True),
                       axis=0, keepdims=True) * inv_cnt           # (1, 1)
        d = a - mean
        var = jnp.sum(jnp.sum(d * d, axis=1, keepdims=True),
                      axis=0, keepdims=True) * inv_cnt            # (1, 1)
        scale = gamma * jax.lax.rsqrt(var + EPS)                  # EUP slot
        return jnp.maximum(d * scale + beta, 0.0)

    xp = x_ref[...].astype(f32)                                   # (2n, hw)

    # ---- layer 1: conv(2->1, 3x3, pad=1) + BN + ReLU (channels on sublanes) --
    acc0 = jnp.zeros((n, hw), f32)
    acc1 = jnp.zeros((n, hw), f32)
    for tap, t in taps(xp):                      # one roll + one mask serves both channels
        acc0 = acc0 + t[:n] * w1_ref[tap]        # channel 0 weight (SMEM scalar)
        acc1 = acc1 + t[n:] * w1_ref[9 + tap]    # channel 1 weight
    y1 = bn_relu(acc0 + acc1, bn_ref[0], bn_ref[1])               # (n, hw)

    # ---- layer 2: conv(1->1, 3x3, pad=1) + BN + ReLU -------------------------
    acc2 = jnp.zeros((n, hw), f32)
    for tap, t in taps(y1):
        acc2 = acc2 + t * w2_ref[tap]
    out_ref[...] = bn_relu(acc2, bn_ref[2], bn_ref[3])            # lane-dense store


def _forward_groups_impl(xs, w1_flat, w2_flat, bn):
    """xs: (G, N, CIN, H, W) -> (G, N, 1, H, W). Each group g gets its own BN
    statistics, i.e. identical to applying the module independently per group."""
    g, n, cin, h, w = xs.shape
    assert cin == CIN
    hw = h * w

    # Pack channels onto the sublane axis: rows [0,n)=ch0, rows [n,2n)=ch1.
    xp = jnp.transpose(xs, (0, 2, 1, 3, 4)).reshape(g, cin * n, hw)
    xp = xp.astype(jnp.float32)

    kernel = functools.partial(_unit_kernel, n=n, h=h, w=w)
    out = pl.pallas_call(
        kernel,
        out_shape=jax.ShapeDtypeStruct((g, n, hw), jnp.float32),
        grid=(g,),
        in_specs=[
            pl.BlockSpec((None, cin * n, hw), lambda i: (i, 0, 0)),    # activations (VMEM)
            pl.BlockSpec(memory_space=pltpu.MemorySpace.SMEM),         # conv1 weights (18,)
            pl.BlockSpec(memory_space=pltpu.MemorySpace.SMEM),         # conv2 weights (9,)
            pl.BlockSpec(memory_space=pltpu.MemorySpace.SMEM),         # gamma1,beta1,gamma2,beta2
        ],
        out_specs=pl.BlockSpec((None, n, hw), lambda i: (i, 0, 0)),
        compiler_params=pltpu.CompilerParams(
            dimension_semantics=("parallel",)),    # independent groups; v7x can use both TCs
    )(xp, w1_flat, w2_flat, bn)

    return out.reshape(g, n, 1, h, w)


_forward_groups = jax.jit(_forward_groups_impl)


def basic_unit_forward_batched(xs, w1, w2, gamma1, beta1, gamma2, beta2):
    """xs: (G, N, 2, H, W) — G independent batches in ONE kernel launch."""
    w1_flat = w1.reshape(-1).astype(jnp.float32)   # (1,2,3,3) -> (18,)
    w2_flat = w2.reshape(-1).astype(jnp.float32)   # (1,1,3,3) -> (9,)
    bn = jnp.stack([jnp.asarray(gamma1, jnp.float32), jnp.asarray(beta1, jnp.float32),
                    jnp.asarray(gamma2, jnp.float32), jnp.asarray(beta2, jnp.float32)])
    return _forward_groups(xs, w1_flat, w2_flat, bn)


def basic_unit_forward(x, w1, w2, gamma1, beta1, gamma2, beta2):
    """Module-exact forward. x: (N, 2, H, W) float -> (N, 1, H, W)."""
    return basic_unit_forward_batched(x[None], w1, w2, gamma1, beta1, gamma2, beta2)[0]


def reference(x, w1, w2, g1, b1, g2, b2):
    def conv(v, wgt):
        return jax.lax.conv_general_dilated(
            v, wgt, (1, 1), ((1, 1), (1, 1)),
            dimension_numbers=("NCHW", "OIHW", "NCHW"))

    def bn_relu(y, g, b):
        mean = jnp.mean(y, axis=(0, 2, 3), keepdims=True)
        var = jnp.mean((y - mean) ** 2, axis=(0, 2, 3), keepdims=True)
        return jnp.maximum(g * (y - mean) / jnp.sqrt(var + EPS) + b, 0.0)

    y = bn_relu(conv(x, w1), g1, b1)
    return bn_relu(conv(y, w2), g2, b2)


if __name__ == "__main__":
    key = jax.random.PRNGKey(0)
    kx, k1, k2, kg = jax.random.split(key, 4)

    N, H, W = 8, 16, 16          # batch of 8 -> full 8-sublane vreg occupancy
    x = jax.random.normal(kx, (N, CIN, H, W), jnp.float32)

    # Deterministic conv-weight init (kaiming-uniform-like bounds, no bias).
    bound1 = 1.0 / (CIN * 3 * 3) ** 0.5
    bound2 = 1.0 / (1 * 3 * 3) ** 0.5
    w1 = jax.random.uniform(k1, (1, CIN, 3, 3), jnp.float32, -bound1, bound1)
    w2 = jax.random.uniform(k2, (1, 1, 3, 3), jnp.float32, -bound2, bound2)
    gamma1 = jnp.float32(1.0); beta1 = jnp.float32(0.0)   # BatchNorm2d defaults
    gamma2 = jnp.float32(1.0); beta2 = jnp.float32(0.0)

    # 1) Module-exact forward (single batch; BN stats over the whole batch).
    y = basic_unit_forward(x, w1, w2, gamma1, beta1, gamma2, beta2)
    jax.block_until_ready(y)
    y_ref = reference(x, w1, w2, gamma1, beta1, gamma2, beta2)
    assert y.shape == (N, 1, H, W)
    assert jnp.allclose(y, y_ref, atol=1e-3, rtol=1e-3)

    # 2) Launch-amortized path: 4 independent batches in ONE pallas_call
    #    (grid=(4,), dimension_semantics=("parallel",)).
    G = 4
    xs = jax.random.normal(kg, (G, N, CIN, H, W), jnp.float32)
    ys = basic_unit_forward_batched(xs, w1, w2, gamma1, beta1, gamma2, beta2)
    jax.block_until_ready(ys)
    ys_ref = jax.vmap(lambda xi: reference(xi, w1, w2, gamma1, beta1, gamma2, beta2))(xs)
    assert ys.shape == (G, N, 1, H, W)
    assert jnp.allclose(ys, ys_ref, atol=1e-3, rtol=1e-3)

    print("KERNEL_OK")
</pallas_src>

<mosaic_0001>
module attributes {stable_mosaic.version = 11 : i64} {
  func.func @_unit_kernel(%arg0: i32, %arg1: memref<1x16x256xf32, #tpu.memory_space<vmem>>, %arg2: memref<18xf32, #tpu.memory_space<smem>>, %arg3: memref<9xf32, #tpu.memory_space<smem>>, %arg4: memref<4xf32, #tpu.memory_space<smem>>, %arg5: memref<1x8x256xf32, #tpu.memory_space<vmem>>) attributes {dimension_semantics = [#tpu.dimension_semantics<parallel>], iteration_bounds = array<i64: 1>, scalar_prefetch = 0 : i64, scratch_operands = 0 : i64, tpu.core_type = #tpu.core_type<tc>, window_params = [{transform_indices = @transform_0, window_bounds = array<i64: 1, 16, 256>}, {transform_indices = @transform_1, window_bounds = array<i64: 18>}, {transform_indices = @transform_2, window_bounds = array<i64: 9>}, {transform_indices = @transform_3, window_bounds = array<i64: 4>}, {transform_indices = @transform_4, window_bounds = array<i64: 1, 8, 256>}]} {
    %0 = tpu.iota {dimensions = array<i32: 1>} : vector<1x256xi32>
    %c4_i32 = arith.constant 4 : i32
    %1 = vector.broadcast %c4_i32 : i32 to vector<1x256xi32>
    %2 = arith.shrsi %0, %1 : vector<1x256xi32>
    %c15_i32 = arith.constant 15 : i32
    %3 = vector.broadcast %c15_i32 : i32 to vector<1x256xi32>
    %4 = arith.andi %0, %3 : vector<1x256xi32>
    %c1_i32 = arith.constant 1 : i32
    %5 = vector.broadcast %c1_i32 : i32 to vector<1x256xi32>
    %6 = arith.cmpi sge, %2, %5 : vector<1x256xi32>
    %7 = arith.extui %6 : vector<1x256xi1> to vector<1x256xi32>
    %8 = arith.sitofp %7 : vector<1x256xi32> to vector<1x256xf32>
    %c14_i32 = arith.constant 14 : i32
    %9 = vector.broadcast %c14_i32 : i32 to vector<1x256xi32>
    %10 = arith.cmpi sle, %2, %9 : vector<1x256xi32>
    %11 = arith.extui %10 : vector<1x256xi1> to vector<1x256xi32>
    %12 = arith.sitofp %11 : vector<1x256xi32> to vector<1x256xf32>
    %c1_i32_0 = arith.constant 1 : i32
    %13 = vector.broadcast %c1_i32_0 : i32 to vector<1x256xi32>
    %14 = arith.cmpi sge, %4, %13 : vector<1x256xi32>
    %15 = arith.extui %14 : vector<1x256xi1> to vector<1x256xi32>
    %16 = arith.sitofp %15 : vector<1x256xi32> to vector<1x256xf32>
    %c14_i32_1 = arith.constant 14 : i32
    %17 = vector.broadcast %c14_i32_1 : i32 to vector<1x256xi32>
    %18 = arith.cmpi sle, %4, %17 : vector<1x256xi32>
    %19 = arith.extui %18 : vector<1x256xi1> to vector<1x256xi32>
    %20 = arith.sitofp %19 : vector<1x256xi32> to vector<1x256xf32>
    %21 = arith.mulf %8, %16 : vector<1x256xf32>
    %22 = arith.mulf %8, %20 : vector<1x256xf32>
    %23 = arith.mulf %12, %16 : vector<1x256xf32>
    %24 = arith.mulf %12, %20 : vector<1x256xf32>
    %c0 = arith.constant 0 : index
    %c0_2 = arith.constant 0 : index
    %c0_3 = arith.constant 0 : index
    %25 = vector.load %arg1[%c0, %c0_2, %c0_3] : memref<1x16x256xf32, #tpu.memory_space<vmem>>, vector<1x16x256xf32>
    %26 = vector.shape_cast %25 : vector<1x16x256xf32> to vector<16x256xf32>
    %cst = arith.constant 0.000000e+00 : f32
    %27 = vector.broadcast %cst : f32 to vector<8x256xf32>
    %cst_4 = arith.constant 0.000000e+00 : f32
    %28 = vector.broadcast %cst_4 : f32 to vector<8x256xf32>
    %c17_i32 = arith.constant 17 : i32
    %29 = tpu.dynamic_rotate %26 by %c17_i32 dim 1 : vector<16x256xf32>, i32 -> vector<16x256xf32>
    %30 = vector.broadcast %21 : vector<1x256xf32> to vector<16x256xf32>
    %31 = arith.mulf %29, %30 : vector<16x256xf32>
    %32 = vector.extract_strided_slice %31 {offsets = [0, 0], sizes = [8, 256], strides = [1, 1]} : vector<16x256xf32> to vector<8x256xf32>
    %c0_5 = arith.constant 0 : index
    %33 = memref.load %arg2[%c0_5] : memref<18xf32, #tpu.memory_space<smem>>
    %34 = vector.broadcast %33 : f32 to vector<8x256xf32>
    %35 = arith.mulf %32, %34 : vector<8x256xf32>
    %36 = arith.addf %27, %35 : vector<8x256xf32>
    %37 = vector.extract_strided_slice %31 {offsets = [8, 0], sizes = [8, 256], strides = [1, 1]} : vector<16x256xf32> to vector<8x256xf32>
    %c9 = arith.constant 9 : index
    %38 = memref.load %arg2[%c9] : memref<18xf32, #tpu.memory_space<smem>>
    %39 = vector.broadcast %38 : f32 to vector<8x256xf32>
    %40 = arith.mulf %37, %39 : vector<8x256xf32>
    %41 = arith.addf %28, %40 : vector<8x256xf32>
    %c16_i32 = arith.constant 16 : i32
    %42 = tpu.dynamic_rotate %26 by %c16_i32 dim 1 : vector<16x256xf32>, i32 -> vector<16x256xf32>
    %43 = vector.broadcast %8 : vector<1x256xf32> to vector<16x256xf32>
    %44 = arith.mulf %42, %43 : vector<16x256xf32>
    %45 = vector.extract_strided_slice %44 {offsets = [0, 0], sizes = [8, 256], strides = [1, 1]} : vector<16x256xf32> to vector<8x256xf32>
    %c1 = arith.constant 1 : index
    %46 = memref.load %arg2[%c1] : memref<18xf32, #tpu.memory_space<smem>>
    %47 = vector.broadcast %46 : f32 to vector<8x256xf32>
    %48 = arith.mulf %45, %47 : vector<8x256xf32>
    %49 = arith.addf %36, %48 : vector<8x256xf32>
    %50 = vector.extract_strided_slice %44 {offsets = [8, 0], sizes = [8, 256], strides = [1, 1]} : vector<16x256xf32> to vector<8x256xf32>
    %c10 = arith.constant 10 : index
    %51 = memref.load %arg2[%c10] : memref<18xf32, #tpu.memory_space<smem>>
    %52 = vector.broadcast %51 : f32 to vector<8x256xf32>
    %53 = arith.mulf %50, %52 : vector<8x256xf32>
    %54 = arith.addf %41, %53 : vector<8x256xf32>
    %c15_i32_6 = arith.constant 15 : i32
    %55 = tpu.dynamic_rotate %26 by %c15_i32_6 dim 1 : vector<16x256xf32>, i32 -> vector<16x256xf32>
    %56 = vector.broadcast %22 : vector<1x256xf32> to vector<16x256xf32>
    %57 = arith.mulf %55, %56 : vector<16x256xf32>
    %58 = vector.extract_strided_slice %57 {offsets = [0, 0], sizes = [8, 256], strides = [1, 1]} : vector<16x256xf32> to vector<8x256xf32>
    %c2 = arith.constant 2 : index
    %59 = memref.load %arg2[%c2] : memref<18xf32, #tpu.memory_space<smem>>
    %60 = vector.broadcast %59 : f32 to vector<8x256xf32>
    %61 = arith.mulf %58, %60 : vector<8x256xf32>
    %62 = arith.addf %49, %61 : vector<8x256xf32>
    %63 = vector.extract_strided_slice %57 {offsets = [8, 0], sizes = [8, 256], strides = [1, 1]} : vector<16x256xf32> to vector<8x256xf32>
    %c11 = arith.constant 11 : index
    %64 = memref.load %arg2[%c11] : memref<18xf32, #tpu.memory_space<smem>>
    %65 = vector.broadcast %64 : f32 to vector<8x256xf32>
    %66 = arith.mulf %63, %65 : vector<8x256xf32>
    %67 = arith.addf %54, %66 : vector<8x256xf32>
    %c1_i32_7 = arith.constant 1 : i32
    %68 = tpu.dynamic_rotate %26 by %c1_i32_7 dim 1 : vector<16x256xf32>, i32 -> vector<16x256xf32>
    %69 = vector.broadcast %16 : vector<1x256xf32> to vector<16x256xf32>
    %70 = arith.mulf %68, %69 : vector<16x256xf32>
    %71 = vector.extract_strided_slice %70 {offsets = [0, 0], sizes = [8, 256], strides = [1, 1]} : vector<16x256xf32> to vector<8x256xf32>
    %c3 = arith.constant 3 : index
    %72 = memref.load %arg2[%c3] : memref<18xf32, #tpu.memory_space<smem>>
    %73 = vector.broadcast %72 : f32 to vector<8x256xf32>
    %74 = arith.mulf %71, %73 : vector<8x256xf32>
    %75 = arith.addf %62, %74 : vector<8x256xf32>
    %76 = vector.extract_strided_slice %70 {offsets = [8, 0], sizes = [8, 256], strides = [1, 1]} : vector<16x256xf32> to vector<8x256xf32>
    %c12 = arith.constant 12 : index
    %77 = memref.load %arg2[%c12] : memref<18xf32, #tpu.memory_space<smem>>
    %78 = vector.broadcast %77 : f32 to vector<8x256xf32>
    %79 = arith.mulf %76, %78 : vector<8x256xf32>
    %80 = arith.addf %67, %79 : vector<8x256xf32>
    %81 = vector.extract_strided_slice %26 {offsets = [0, 0], sizes = [8, 256], strides = [1, 1]} : vector<16x256xf32> to vector<8x256xf32>
    %c4 = arith.constant 4 : index
    %82 = memref.load %arg2[%c4] : memref<18xf32, #tpu.memory_space<smem>>
    %83 = vector.broadcast %82 : f32 to vector<8x256xf32>
    %84 = arith.mulf %81, %83 : vector<8x256xf32>
    %85 = arith.addf %75, %84 : vector<8x256xf32>
    %86 = vector.extract_strided_slice %26 {offsets = [8, 0], sizes = [8, 256], strides = [1, 1]} : vector<16x256xf32> to vector<8x256xf32>
    %c13 = arith.constant 13 : index
    %87 = memref.load %arg2[%c13] : memref<18xf32, #tpu.memory_space<smem>>
    %88 = vector.broadcast %87 : f32 to vector<8x256xf32>
    %89 = arith.mulf %86, %88 : vector<8x256xf32>
    %90 = arith.addf %80, %89 : vector<8x256xf32>
    %c255_i32 = arith.constant 255 : i32
    %91 = tpu.dynamic_rotate %26 by %c255_i32 dim 1 : vector<16x256xf32>, i32 -> vector<16x256xf32>
    %92 = vector.broadcast %20 : vector<1x256xf32> to vector<16x256xf32>
    %93 = arith.mulf %91, %92 : vector<16x256xf32>
    %94 = vector.extract_strided_slice %93 {offsets = [0, 0], sizes = [8, 256], strides = [1, 1]} : vector<16x256xf32> to vector<8x256xf32>
    %c5 = arith.constant 5 : index
    %95 = memref.load %arg2[%c5] : memref<18xf32, #tpu.memory_space<smem>>
    %96 = vector.broadcast %95 : f32 to vector<8x256xf32>
    %97 = arith.mulf %94, %96 : vector<8x256xf32>
    %98 = arith.addf %85, %97 : vector<8x256xf32>
    %99 = vector.extract_strided_slice %93 {offsets = [8, 0], sizes = [8, 256], strides = [1, 1]} : vector<16x256xf32> to vector<8x256xf32>
    %c14 = arith.constant 14 : index
    %100 = memref.load %arg2[%c14] : memref<18xf32, #tpu.memory_space<smem>>
    %101 = vector.broadcast %100 : f32 to vector<8x256xf32>
    %102 = arith.mulf %99, %101 : vector<8x256xf32>
    %103 = arith.addf %90, %102 : vector<8x256xf32>
    %c241_i32 = arith.constant 241 : i32
    %104 = tpu.dynamic_rotate %26 by %c241_i32 dim 1 : vector<16x256xf32>, i32 -> vector<16x256xf32>
    %105 = vector.broadcast %23 : vector<1x256xf32> to vector<16x256xf32>
    %106 = arith.mulf %104, %105 : vector<16x256xf32>
    %107 = vector.extract_strided_slice %106 {offsets = [0, 0], sizes = [8, 256], strides = [1, 1]} : vector<16x256xf32> to vector<8x256xf32>
    %c6 = arith.constant 6 : index
    %108 = memref.load %arg2[%c6] : memref<18xf32, #tpu.memory_space<smem>>
    %109 = vector.broadcast %108 : f32 to vector<8x256xf32>
    %110 = arith.mulf %107, %109 : vector<8x256xf32>
    %111 = arith.addf %98, %110 : vector<8x256xf32>
    %112 = vector.extract_strided_slice %106 {offsets = [8, 0], sizes = [8, 256], strides = [1, 1]} : vector<16x256xf32> to vector<8x256xf32>
    %c15 = arith.constant 15 : index
    %113 = memref.load %arg2[%c15] : memref<18xf32, #tpu.memory_space<smem>>
    %114 = vector.broadcast %113 : f32 to vector<8x256xf32>
    %115 = arith.mulf %112, %114 : vector<8x256xf32>
    %116 = arith.addf %103, %115 : vector<8x256xf32>
    %c240_i32 = arith.constant 240 : i32
    %117 = tpu.dynamic_rotate %26 by %c240_i32 dim 1 : vector<16x256xf32>, i32 -> vector<16x256xf32>
    %118 = vector.broadcast %12 : vector<1x256xf32> to vector<16x256xf32>
    %119 = arith.mulf %117, %118 : vector<16x256xf32>
    %120 = vector.extract_strided_slice %119 {offsets = [0, 0], sizes = [8, 256], strides = [1, 1]} : vector<16x256xf32> to vector<8x256xf32>
    %c7 = arith.constant 7 : index
    %121 = memref.load %arg2[%c7] : memref<18xf32, #tpu.memory_space<smem>>
    %122 = vector.broadcast %121 : f32 to vector<8x256xf32>
    %123 = arith.mulf %120, %122 : vector<8x256xf32>
    %124 = arith.addf %111, %123 : vector<8x256xf32>
    %125 = vector.extract_strided_slice %119 {offsets = [8, 0], sizes = [8, 256], strides = [1, 1]} : vector<16x256xf32> to vector<8x256xf32>
    %c16 = arith.constant 16 : index
    %126 = memref.load %arg2[%c16] : memref<18xf32, #tpu.memory_space<smem>>
    %127 = vector.broadcast %126 : f32 to vector<8x256xf32>
    %128 = arith.mulf %125, %127 : vector<8x256xf32>
    %129 = arith.addf %116, %128 : vector<8x256xf32>
    %c239_i32 = arith.constant 239 : i32
    %130 = tpu.dynamic_rotate %26 by %c239_i32 dim 1 : vector<16x256xf32>, i32 -> vector<16x256xf32>
    %131 = vector.broadcast %24 : vector<1x256xf32> to vector<16x256xf32>
    %132 = arith.mulf %130, %131 : vector<16x256xf32>
    %133 = vector.extract_strided_slice %132 {offsets = [0, 0], sizes = [8, 256], strides = [1, 1]} : vector<16x256xf32> to vector<8x256xf32>
    %c8 = arith.constant 8 : index
    %134 = memref.load %arg2[%c8] : memref<18xf32, #tpu.memory_space<smem>>
    %135 = vector.broadcast %134 : f32 to vector<8x256xf32>
    %136 = arith.mulf %133, %135 : vector<8x256xf32>
    %137 = arith.addf %124, %136 : vector<8x256xf32>
    %138 = vector.extract_strided_slice %132 {offsets = [8, 0], sizes = [8, 256], strides = [1, 1]} : vector<16x256xf32> to vector<8x256xf32>
    %c17 = arith.constant 17 : index
    %139 = memref.load %arg2[%c17] : memref<18xf32, #tpu.memory_space<smem>>
    %140 = vector.broadcast %139 : f32 to vector<8x256xf32>
    %141 = arith.mulf %138, %140 : vector<8x256xf32>
    %142 = arith.addf %129, %141 : vector<8x256xf32>
    %143 = arith.addf %137, %142 : vector<8x256xf32>
    %c0_8 = arith.constant 0 : index
    %144 = memref.load %arg4[%c0_8] : memref<4xf32, #tpu.memory_space<smem>>
    %c1_9 = arith.constant 1 : index
    %145 = memref.load %arg4[%c1_9] : memref<4xf32, #tpu.memory_space<smem>>
    %cst_10 = arith.constant dense<0.000000e+00> : vector<8xf32>
    %146 = vector.multi_reduction <add>, %143, %cst_10 [1] : vector<8x256xf32> to vector<8xf32>
    %147 = vector.shape_cast %146 : vector<8xf32> to vector<8x1xf32>
    %cst_11 = arith.constant dense<0.000000e+00> : vector<1xf32>
    %148 = vector.multi_reduction <add>, %147, %cst_11 [0] : vector<8x1xf32> to vector<1xf32>
    %149 = vector.shape_cast %148 : vector<1xf32> to vector<1x1xf32>
    %cst_12 = arith.constant 4.8828125E-4 : f32
    %150 = vector.broadcast %cst_12 : f32 to vector<1x1xf32>
    %151 = arith.mulf %149, %150 : vector<1x1xf32>
    %152 = vector.broadcast %151 : vector<1x1xf32> to vector<8x256xf32>
    %153 = arith.subf %143, %152 : vector<8x256xf32>
    %154 = arith.mulf %153, %153 : vector<8x256xf32>
    %cst_13 = arith.constant dense<0.000000e+00> : vector<8xf32>
    %155 = vector.multi_reduction <add>, %154, %cst_13 [1] : vector<8x256xf32> to vector<8xf32>
    %156 = vector.shape_cast %155 : vector<8xf32> to vector<8x1xf32>
    %cst_14 = arith.constant dense<0.000000e+00> : vector<1xf32>
    %157 = vector.multi_reduction <add>, %156, %cst_14 [0] : vector<8x1xf32> to vector<1xf32>
    %158 = vector.shape_cast %157 : vector<1xf32> to vector<1x1xf32>
    %cst_15 = arith.constant 4.8828125E-4 : f32
    %159 = vector.broadcast %cst_15 : f32 to vector<1x1xf32>
    %160 = arith.mulf %158, %159 : vector<1x1xf32>
    %cst_16 = arith.constant 9.99999974E-6 : f32
    %161 = vector.broadcast %cst_16 : f32 to vector<1x1xf32>
    %162 = arith.addf %160, %161 : vector<1x1xf32>
    %163 = math.rsqrt %162 : vector<1x1xf32>
    %164 = vector.broadcast %144 : f32 to vector<1x1xf32>
    %165 = arith.mulf %164, %163 : vector<1x1xf32>
    %166 = vector.broadcast %165 : vector<1x1xf32> to vector<8x256xf32>
    %167 = arith.mulf %153, %166 : vector<8x256xf32>
    %168 = vector.broadcast %145 : f32 to vector<8x256xf32>
    %169 = arith.addf %167, %168 : vector<8x256xf32>
    %cst_17 = arith.constant 0.000000e+00 : f32
    %170 = vector.broadcast %cst_17 : f32 to vector<8x256xf32>
    %171 = arith.maximumf %169, %170 : vector<8x256xf32>
    %cst_18 = arith.constant 0.000000e+00 : f32
    %172 = vector.broadcast %cst_18 : f32 to vector<8x256xf32>
    %c17_i32_19 = arith.constant 17 : i32
    %173 = tpu.dynamic_rotate %171 by %c17_i32_19 dim 1 : vector<8x256xf32>, i32 -> vector<8x256xf32>
    %174 = vector.broadcast %21 : vector<1x256xf32> to vector<8x256xf32>
    %175 = arith.mulf %173, %174 : vector<8x256xf32>
    %c0_20 = arith.constant 0 : index
    %176 = memref.load %arg3[%c0_20] : memref<9xf32, #tpu.memory_space<smem>>
    %177 = vector.broadcast %176 : f32 to vector<8x256xf32>
    %178 = arith.mulf %175, %177 : vector<8x256xf32>
    %179 = arith.addf %172, %178 : vector<8x256xf32>
    %c16_i32_21 = arith.constant 16 : i32
    %180 = tpu.dynamic_rotate %171 by %c16_i32_21 dim 1 : vector<8x256xf32>, i32 -> vector<8x256xf32>
    %181 = vector.broadcast %8 : vector<1x256xf32> to vector<8x256xf32>
    %182 = arith.mulf %180, %181 : vector<8x256xf32>
    %c1_22 = arith.constant 1 : index
    %183 = memref.load %arg3[%c1_22] : memref<9xf32, #tpu.memory_space<smem>>
    %184 = vector.broadcast %183 : f32 to vector<8x256xf32>
    %185 = arith.mulf %182, %184 : vector<8x256xf32>
    %186 = arith.addf %179, %185 : vector<8x256xf32>
    %c15_i32_23 = arith.constant 15 : i32
    %187 = tpu.dynamic_rotate %171 by %c15_i32_23 dim 1 : vector<8x256xf32>, i32 -> vector<8x256xf32>
    %188 = vector.broadcast %22 : vector<1x256xf32> to vector<8x256xf32>
    %189 = arith.mulf %187, %188 : vector<8x256xf32>
    %c2_24 = arith.constant 2 : index
    %190 = memref.load %arg3[%c2_24] : memref<9xf32, #tpu.memory_space<smem>>
    %191 = vector.broadcast %190 : f32 to vector<8x256xf32>
    %192 = arith.mulf %189, %191 : vector<8x256xf32>
    %193 = arith.addf %186, %192 : vector<8x256xf32>
    %c1_i32_25 = arith.constant 1 : i32
    %194 = tpu.dynamic_rotate %171 by %c1_i32_25 dim 1 : vector<8x256xf32>, i32 -> vector<8x256xf32>
    %195 = vector.broadcast %16 : vector<1x256xf32> to vector<8x256xf32>
    %196 = arith.mulf %194, %195 : vector<8x256xf32>
    %c3_26 = arith.constant 3 : index
    %197 = memref.load %arg3[%c3_26] : memref<9xf32, #tpu.memory_space<smem>>
    %198 = vector.broadcast %197 : f32 to vector<8x256xf32>
    %199 = arith.mulf %196, %198 : vector<8x256xf32>
    %200 = arith.addf %193, %199 : vector<8x256xf32>
    %c4_27 = arith.constant 4 : index
    %201 = memref.load %arg3[%c4_27] : memref<9xf32, #tpu.memory_space<smem>>
    %202 = vector.broadcast %201 : f32 to vector<8x256xf32>
    %203 = arith.mulf %171, %202 : vector<8x256xf32>
    %204 = arith.addf %200, %203 : vector<8x256xf32>
    %c255_i32_28 = arith.constant 255 : i32
    %205 = tpu.dynamic_rotate %171 by %c255_i32_28 dim 1 : vector<8x256xf32>, i32 -> vector<8x256xf32>
    %206 = vector.broadcast %20 : vector<1x256xf32> to vector<8x256xf32>
    %207 = arith.mulf %205, %206 : vector<8x256xf32>
    %c5_29 = arith.constant 5 : index
    %208 = memref.load %arg3[%c5_29] : memref<9xf32, #tpu.memory_space<smem>>
    %209 = vector.broadcast %208 : f32 to vector<8x256xf32>
    %210 = arith.mulf %207, %209 : vector<8x256xf32>
    %211 = arith.addf %204, %210 : vector<8x256xf32>
    %c241_i32_30 = arith.constant 241 : i32
    %212 = tpu.dynamic_rotate %171 by %c241_i32_30 dim 1 : vector<8x256xf32>, i32 -> vector<8x256xf32>
    %213 = vector.broadcast %23 : vector<1x256xf32> to vector<8x256xf32>
    %214 = arith.mulf %212, %213 : vector<8x256xf32>
    %c6_31 = arith.constant 6 : index
    %215 = memref.load %arg3[%c6_31] : memref<9xf32, #tpu.memory_space<smem>>
    %216 = vector.broadcast %215 : f32 to vector<8x256xf32>
    %217 = arith.mulf %214, %216 : vector<8x256xf32>
    %218 = arith.addf %211, %217 : vector<8x256xf32>
    %c240_i32_32 = arith.constant 240 : i32
    %219 = tpu.dynamic_rotate %171 by %c240_i32_32 dim 1 : vector<8x256xf32>, i32 -> vector<8x256xf32>
    %220 = vector.broadcast %12 : vector<1x256xf32> to vector<8x256xf32>
    %221 = arith.mulf %219, %220 : vector<8x256xf32>
    %c7_33 = arith.constant 7 : index
    %222 = memref.load %arg3[%c7_33] : memref<9xf32, #tpu.memory_space<smem>>
    %223 = vector.broadcast %222 : f32 to vector<8x256xf32>
    %224 = arith.mulf %221, %223 : vector<8x256xf32>
    %225 = arith.addf %218, %224 : vector<8x256xf32>
    %c239_i32_34 = arith.constant 239 : i32
    %226 = tpu.dynamic_rotate %171 by %c239_i32_34 dim 1 : vector<8x256xf32>, i32 -> vector<8x256xf32>
    %227 = vector.broadcast %24 : vector<1x256xf32> to vector<8x256xf32>
    %228 = arith.mulf %226, %227 : vector<8x256xf32>
    %c8_35 = arith.constant 8 : index
    %229 = memref.load %arg3[%c8_35] : memref<9xf32, #tpu.memory_space<smem>>
    %230 = vector.broadcast %229 : f32 to vector<8x256xf32>
    %231 = arith.mulf %228, %230 : vector<8x256xf32>
    %232 = arith.addf %225, %231 : vector<8x256xf32>
    %c2_36 = arith.constant 2 : index
    %233 = memref.load %arg4[%c2_36] : memref<4xf32, #tpu.memory_space<smem>>
    %c3_37 = arith.constant 3 : index
    %234 = memref.load %arg4[%c3_37] : memref<4xf32, #tpu.memory_space<smem>>
    %cst_38 = arith.constant dense<0.000000e+00> : vector<8xf32>
    %235 = vector.multi_reduction <add>, %232, %cst_38 [1] : vector<8x256xf32> to vector<8xf32>
    %236 = vector.shape_cast %235 : vector<8xf32> to vector<8x1xf32>
    %cst_39 = arith.constant dense<0.000000e+00> : vector<1xf32>
    %237 = vector.multi_reduction <add>, %236, %cst_39 [0] : vector<8x1xf32> to vector<1xf32>
    %238 = vector.shape_cast %237 : vector<1xf32> to vector<1x1xf32>
    %cst_40 = arith.constant 4.8828125E-4 : f32
    %239 = vector.broadcast %cst_40 : f32 to vector<1x1xf32>
    %240 = arith.mulf %238, %239 : vector<1x1xf32>
    %241 = vector.broadcast %240 : vector<1x1xf32> to vector<8x256xf32>
    %242 = arith.subf %232, %241 : vector<8x256xf32>
    %243 = arith.mulf %242, %242 : vector<8x256xf32>
    %cst_41 = arith.constant dense<0.000000e+00> : vector<8xf32>
    %244 = vector.multi_reduction <add>, %243, %cst_41 [1] : vector<8x256xf32> to vector<8xf32>
    %245 = vector.shape_cast %244 : vector<8xf32> to vector<8x1xf32>
    %cst_42 = arith.constant dense<0.000000e+00> : vector<1xf32>
    %246 = vector.multi_reduction <add>, %245, %cst_42 [0] : vector<8x1xf32> to vector<1xf32>
    %247 = vector.shape_cast %246 : vector<1xf32> to vector<1x1xf32>
    %cst_43 = arith.constant 4.8828125E-4 : f32
    %248 = vector.broadcast %cst_43 : f32 to vector<1x1xf32>
    %249 = arith.mulf %247, %248 : vector<1x1xf32>
    %cst_44 = arith.constant 9.99999974E-6 : f32
    %250 = vector.broadcast %cst_44 : f32 to vector<1x1xf32>
    %251 = arith.addf %249, %250 : vector<1x1xf32>
    %252 = math.rsqrt %251 : vector<1x1xf32>
    %253 = vector.broadcast %233 : f32 to vector<1x1xf32>
    %254 = arith.mulf %253, %252 : vector<1x1xf32>
    %255 = vector.broadcast %254 : vector<1x1xf32> to vector<8x256xf32>
    %256 = arith.mulf %242, %255 : vector<8x256xf32>
    %257 = vector.broadcast %234 : f32 to vector<8x256xf32>
    %258 = arith.addf %256, %257 : vector<8x256xf32>
    %cst_45 = arith.constant 0.000000e+00 : f32
    %259 = vector.broadcast %cst_45 : f32 to vector<8x256xf32>
    %260 = arith.maximumf %258, %259 : vector<8x256xf32>
    %c0_46 = arith.constant 0 : index
    %c0_47 = arith.constant 0 : index
    %c0_48 = arith.constant 0 : index
    %261 = vector.load %arg5[%c0_46, %c0_47, %c0_48] : memref<1x8x256xf32, #tpu.memory_space<vmem>>, vector<1x8x256xf32>
    %262 = vector.shape_cast %261 : vector<1x8x256xf32> to vector<8x256xf32>
    %263 = vector.shape_cast %260 : vector<8x256xf32> to vector<1x8x256xf32>
    tpu.vector_store %arg5[%c0_46, %c0_47, %c0_48], %263 {strides = array<i32>} : memref<1x8x256xf32, #tpu.memory_space<vmem>>, vector<1x8x256xf32>,
    return
  }
  func.func @transform_0(%arg0: i32) -> (i32, i32, i32) {
    %c0_i32 = arith.constant 0 : i32
    %c0_i32_0 = arith.constant 0 : i32
    %c0_i32_1 = arith.constant 0 : i32
    return %arg0, %c0_i32, %c0_i32_0 : i32, i32, i32
  }
  func.func @transform_1(%arg0: i32) -> i32 {
    %c0_i32 = arith.constant 0 : i32
    %c0_i32_0 = arith.constant 0 : i32
    return %c0_i32 : i32
  }
  func.func @transform_2(%arg0: i32) -> i32 {
    %c0_i32 = arith.constant 0 : i32
    %c0_i32_0 = arith.constant 0 : i32
    return %c0_i32 : i32
  }
  func.func @transform_3(%arg0: i32) -> i32 {
    %c0_i32 = arith.constant 0 : i32
    %c0_i32_0 = arith.constant 0 : i32
    return %c0_i32 : i32
  }
  func.func @transform_4(%arg0: i32) -> (i32, i32, i32) {
    %c0_i32 = arith.constant 0 : i32
    %c0_i32_0 = arith.constant 0 : i32
    %c0_i32_1 = arith.constant 0 : i32
    return %arg0, %c0_i32, %c0_i32_0 : i32, i32, i32
  }
}

</mosaic_0001>

<llo_original>
// kernel: _forward_groups_impl.1
$region0: #{_forward_groups_impl.1}
  #allocation0 [shape = 'u32[]', space=smem, size = 0x4, offset = 0x4, fixed_abs, tag = 'smem constant byte address 0x4 - core index']
  #allocation1 [shape = 'u32[72,128]{1,0:T(1,128)}', space=vmem, size = 0x9000, scoped, tag = 'internal scratch']
  %s0 = inlined_call_operand.vmem [shape: f32[1,16,256], index: 0, kind: input, shape index: {}]
  %s1 = inlined_call_operand.vmem [shape: f32[18], index: 1, kind: input, shape index: {}]
  %s2 = inlined_call_operand.vmem [shape: f32[9], index: 2, kind: input, shape index: {}]
  %s3 = inlined_call_operand.vmem [shape: f32[4], index: 3, kind: input, shape index: {}]
  %s4 = inlined_call_operand.vmem [shape: f32[1,8,256], index: 4, kind: output, shape index: {}]
  %s5 = sld [smem:[#allocation0]]
  $region38: #{_forward_groups_impl.1} parent=0
    _
  %s7 = ssub.s32 1, %s5
  %s8 = scalar_select 0, %s7, %s5
  $region1: #{_forward_groups_impl.1} parent=0
    #allocation2 [shape = 'u8[512]{0}', space=smem, size = 0x200, scoped, tag = 'input window, operand 1, single buffered']
    #allocation3 [shape = 's32[1]{0}', space=sflag, size = 0x4, scoped, tag = 'scoped memory for _forward_groups_impl.1']
    #allocation4 [shape = 'u8[512]{0}', space=smem, size = 0x200, scoped, tag = 'input window, operand 2, single buffered']
    #allocation5 [shape = 's32[1]{0}', space=sflag, size = 0x4, scoped, tag = 'scoped memory for _forward_groups_impl.1']
    #allocation6 [shape = 'u8[512]{0}', space=smem, size = 0x200, scoped, tag = 'input window, operand 3, single buffered']
    %9 = vsyncpa [#allocation3], 0
    %10 = vsyncpa [#allocation5], 0
    // Predicated region
    $region2: #{_forward_groups_impl.1} parent=1 // pred_check
      _
    $region3: #{_forward_groups_impl.1} parent=1 // pred_check_branch
      %12 = sbr.rel (0) target = $region5
    $region4: #{_forward_groups_impl.1} parent=1 // pred_region
      _
    $region5: #{_forward_groups_impl.1} parent=1 // pred_fallthru
      _
    // Predicated region
    $region6: #{_forward_groups_impl.1} parent=1 // pred_check
      _
    $region7: #{_forward_groups_impl.1} parent=1 // pred_check_branch
      %14 = sbr.rel (0) target = $region9
    $region8: #{_forward_groups_impl.1} parent=1 // pred_region
      %16 = vsyncadd [#allocation3], 0
      %s18 = sshll.u32 %s1, 4
      %s19 = int_to_ptr.vmem [resolvable:$true] %s18
      %21 = dma.vmem_to_smem %s19, 16, [#allocation2], [#allocation3]
    $region9: #{_forward_groups_impl.1} parent=1 // pred_fallthru
      _
    // Predicated region
    $region10: #{_forward_groups_impl.1} parent=1 // pred_check
      _
    $region11: #{_forward_groups_impl.1} parent=1 // pred_check_branch
      %23 = sbr.rel (0) target = $region13
    $region12: #{_forward_groups_impl.1} parent=1 // pred_region
      %25 = vsyncadd [#allocation5], 0
      %s27 = sshll.u32 %s2, 4
      %s28 = int_to_ptr.vmem [resolvable:$true] %s27
      %30 = dma.vmem_to_smem %s28, 16, [#allocation4], [#allocation5]
    $region13: #{_forward_groups_impl.1} parent=1 // pred_fallthru
      _
    // Predicated region
    $region14: #{_forward_groups_impl.1} parent=1 // pred_check
      _
    $region15: #{_forward_groups_impl.1} parent=1 // pred_check_branch
      %32 = sbr.rel (0) target = $region17
    $region16: #{_forward_groups_impl.1} parent=1 // pred_region
      %34 = vsyncadd [#allocation5], 0
      %s36 = sshll.u32 %s3, 4
      %s37 = int_to_ptr.vmem [resolvable:$true] %s36
      %39 = dma.vmem_to_smem %s37, 16, [#allocation6], [#allocation5]
    $region17: #{_forward_groups_impl.1} parent=1 // pred_fallthru
      _
    // Predicated region
    $region18: #{_forward_groups_impl.1} parent=1 // pred_check
      _
    $region19: #{_forward_groups_impl.1} parent=1 // pred_check_branch
      %41 = sbr.rel (0) target = $region21
    $region20: #{_forward_groups_impl.1} parent=1 // pred_region
      %43 = dma.done [#allocation3], 16
    $region21: #{_forward_groups_impl.1} parent=1 // pred_fallthru
      _
    // Predicated region
    $region22: #{_forward_groups_impl.1} parent=1 // pred_check
      _
    $region23: #{_forward_groups_impl.1} parent=1 // pred_check_branch
      %45 = sbr.rel (0) target = $region25
    $region24: #{_forward_groups_impl.1} parent=1 // pred_region
      %47 = dma.done [#allocation5], 16
    $region25: #{_forward_groups_impl.1} parent=1 // pred_fallthru
      _
    // Predicated region
    $region26: #{_forward_groups_impl.1} parent=1 // pred_check
      _
    $region27: #{_forward_groups_impl.1} parent=1 // pred_check_branch
      %49 = sbr.rel (0) target = $region29
    $region28: #{_forward_groups_impl.1} parent=1 // pred_region
      %51 = dma.done [#allocation5], 16
    $region29: #{_forward_groups_impl.1} parent=1 // pred_fallthru
      _
    %52 = sfence
    %v53 = vlaneseq
    %v54 = vand.u32 %v53, 127
    %v55 = vadd.s32 %v54, 128
    %v56 = vshra.s32 %v54, 4
    %v57 = vshra.s32 %v55, 4
    %v58 = vand.u32 %v54, 15
    %v59 = vand.u32 %v55, 15
    %vm60 = vcmp.ge.s32.totalorder %v56, 1
    %vm61 = vcmp.ge.s32.totalorder %v57, 1
    %v62 = vsel %vm60, 1, 0
    %v63 = vsel %vm61, 1, 0
    %v64 = vcvt.s32.f32 %v62
    %v65 = vcvt.s32.f32 %v63
    %vm66 = vcmp.le.s32.totalorder %v56, 14
    %vm67 = vcmp.le.s32.totalorder %v57, 14
    %v68 = vsel %vm66, 1, 0
    %v69 = vsel %vm67, 1, 0
    %v70 = vcvt.s32.f32 %v68
    %v71 = vcvt.s32.f32 %v69
    %vm72 = vcmp.ge.s32.totalorder %v58, 1
    %vm73 = vcmp.ge.s32.totalorder %v59, 1
    %v74 = vsel %vm72, 1, 0
    %v75 = vsel %vm73, 1, 0
    %v76 = vcvt.s32.f32 %v74
    %v77 = vcvt.s32.f32 %v75
    %vm78 = vcmp.le.s32.totalorder %v58, 14
    %vm79 = vcmp.le.s32.totalorder %v59, 14
    %v80 = vsel %vm78, 1, 0
    %v81 = vsel %vm79, 1, 0
    %v82 = vcvt.s32.f32 %v80
    %v83 = vcvt.s32.f32 %v81
    %v84 = vmul.f32 %v64, %v76
    %v85 = vmul.f32 %v65, %v77
    %v86 = vmul.f32 %v64, %v82
    %v87 = vmul.f32 %v65, %v83
    %v88 = vmul.f32 %v70, %v76
    %v89 = vmul.f32 %v71, %v77
    %v90 = vmul.f32 %v70, %v82
    %v91 = vmul.f32 %v71, %v83
    %v92 = vld [vmem:[%s0] sm:$0xff]
    %v93 = vld [vmem:[%s0 + $0x8] sm:$0xff]
    %v94 = vld [vmem:[%s0 + $0x10] sm:$0xff]
    %v95 = vld [vmem:[%s0 + $0x18] sm:$0xff]
    %96 = vrot.lane.b32.xlu0 %v92, 17
    %v97 = vpop.permute.xlu0 %96
    %98 = vrot.lane.b32.xlu0 %v94, 17
    %v99 = vpop.permute.xlu0 %98
    %100 = vrot.lane.b32.xlu0 %v93, 17
    %v101 = vpop.permute.xlu0 %100
    %102 = vrot.lane.b32.xlu0 %v95, 17
    %v103 = vpop.permute.xlu0 %102
    %vm104 = vcmp.lt.s32.totalorder %v54, 17
    %v105 = vsel %vm104, %v97, %v101
    %v106 = vsel %vm104, %v99, %v103
    %v107 = vsel %vm104, %v101, %v97
    %v108 = vsel %vm104, %v103, %v99
    %v109 = vmul.f32 %v107, %v84
    %v110 = vmul.f32 %v105, %v85
    %v111 = vmul.f32 %v108, %v84
    %v112 = vmul.f32 %v106, %v85
    %s113 = sld [smem:[#allocation2]]
    %v114 = vstv %s113
    %v115 = vmul.f32 %v109, %v114
    %v116 = vmul.f32 %v110, %v114
    %v117 = vadd.f32 %v115, 0.0
    %v118 = vadd.f32 %v116, 0.0
    %s119 = sld [smem:[#allocation2 + $0x9]]
    %v120 = vstv %s119
    %v121 = vmul.f32 %v111, %v120
    %v122 = vmul.f32 %v112, %v120
    %v123 = vadd.f32 %v121, 0.0
    %v124 = vadd.f32 %v122, 0.0
    %125 = vrot.lane.b32.xlu0 %v92, 16
    %v126 = vpop.permute.xlu0 %125
    %127 = vrot.lane.b32.xlu0 %v94, 16
    %v128 = vpop.permute.xlu0 %127
    %129 = vrot.lane.b32.xlu0 %v93, 16
    %v130 = vpop.permute.xlu0 %129
    %131 = vrot.lane.b32.xlu0 %v95, 16
    %v132 = vpop.permute.xlu0 %131
    %vm133 = vcmp.lt.s32.totalorder %v54, 16
    %v134 = vsel %vm133, %v126, %v130
    %v135 = vsel %vm133, %v128, %v132
    %v136 = vsel %vm133, %v130, %v126
    %v137 = vsel %vm133, %v132, %v128
    %v138 = vmul.f32 %v136, %v64
    %v139 = vmul.f32 %v134, %v65
    %v140 = vmul.f32 %v137, %v64
    %v141 = vmul.f32 %v135, %v65
    %s142 = sld [smem:[#allocation2 + $0x1]]
    %v143 = vstv %s142
    %v144 = vmul.f32 %v138, %v143
    %v145 = vmul.f32 %v139, %v143
    %v146 = vadd.f32 %v117, %v144
    %v147 = vadd.f32 %v118, %v145
    %s148 = sld [smem:[#allocation2 + $0xa]]
    %v149 = vstv %s148
    %v150 = vmul.f32 %v140, %v149
    %v151 = vmul.f32 %v141, %v149
    %v152 = vadd.f32 %v123, %v150
    %v153 = vadd.f32 %v124, %v151
    %154 = vrot.lane.b32.xlu0 %v92, 15
    %v155 = vpop.permute.xlu0 %154
    %156 = vrot.lane.b32.xlu0 %v94, 15
    %v157 = vpop.permute.xlu0 %156
    %158 = vrot.lane.b32.xlu0 %v93, 15
    %v159 = vpop.permute.xlu0 %158
    %160 = vrot.lane.b32.xlu0 %v95, 15
    %v161 = vpop.permute.xlu0 %160
    %vm162 = vcmp.lt.s32.totalorder %v54, 15
    %v163 = vsel %vm162, %v155, %v159
    %v164 = vsel %vm162, %v157, %v161
    %v165 = vsel %vm162, %v159, %v155
    %v166 = vsel %vm162, %v161, %v157
    %v167 = vmul.f32 %v165, %v86
    %v168 = vmul.f32 %v163, %v87
    %v169 = vmul.f32 %v166, %v86
    %v170 = vmul.f32 %v164, %v87
    %s171 = sld [smem:[#allocation2 + $0x2]]
    %v172 = vstv %s171
    %v173 = vmul.f32 %v167, %v172
    %v174 = vmul.f32 %v168, %v172
    %v175 = vadd.f32 %v146, %v173
    %v176 = vadd.f32 %v147, %v174
    %s177 = sld [smem:[#allocation2 + $0xb]]
    %v178 = vstv %s177
    %v179 = vmul.f32 %v169, %v178
    %v180 = vmul.f32 %v170, %v178
    %v181 = vadd.f32 %v152, %v179
    %v182 = vadd.f32 %v153, %v180
    %183 = vrot.lane.b32.xlu0 %v92, 1
    %v184 = vpop.permute.xlu0 %183
    %185 = vrot.lane.b32.xlu0 %v94, 1
    %v186 = vpop.permute.xlu0 %185
    %187 = vrot.lane.b32.xlu0 %v93, 1
    %v188 = vpop.permute.xlu0 %187
    %189 = vrot.lane.b32.xlu0 %v95, 1
    %v190 = vpop.permute.xlu0 %189
    %vm191 = vcmp.lt.s32.totalorder %v54, 1
    %v192 = vsel %vm191, %v184, %v188
    %v193 = vsel %vm191, %v186, %v190
    %v194 = vsel %vm191, %v188, %v184
    %v195 = vsel %vm191, %v190, %v186
    %v196 = vmul.f32 %v194, %v76
    %v197 = vmul.f32 %v192, %v77
    %v198 = vmul.f32 %v195, %v76
    %v199 = vmul.f32 %v193, %v77
    %s200 = sld [smem:[#allocation2 + $0x3]]
    %v201 = vstv %s200
    %v202 = vmul.f32 %v196, %v201
    %v203 = vmul.f32 %v197, %v201
    %v204 = vadd.f32 %v175, %v202
    %v205 = vadd.f32 %v176, %v203
    %s206 = sld [smem:[#allocation2 + $0xc]]
    %v207 = vstv %s206
    %v208 = vmul.f32 %v198, %v207
    %v209 = vmul.f32 %v199, %v207
    %v210 = vadd.f32 %v181, %v208
    %v211 = vadd.f32 %v182, %v209
    %s212 = sld [smem:[#allocation2 + $0x4]]
    %v213 = vstv %s212
    %v214 = vmul.f32 %v92, %v213
    %v215 = vmul.f32 %v93, %v213
    %v216 = vadd.f32 %v204, %v214
    %v217 = vadd.f32 %v205, %v215
    %s218 = sld [smem:[#allocation2 + $0xd]]
    %v219 = vstv %s218
    %v220 = vmul.f32 %v94, %v219
    %v221 = vmul.f32 %v95, %v219
    %v222 = vadd.f32 %v210, %v220
    %v223 = vadd.f32 %v211, %v221
    %224 = vrot.lane.b32.xlu0 %v92, 127
    %v225 = vpop.permute.xlu0 %224
    %226 = vrot.lane.b32.xlu0 %v94, 127
    %v227 = vpop.permute.xlu0 %226
    %228 = vrot.lane.b32.xlu0 %v93, 127
    %v229 = vpop.permute.xlu0 %228
    %230 = vrot.lane.b32.xlu0 %v95, 127
    %v231 = vpop.permute.xlu0 %230
    %vm232 = vcmp.lt.s32.totalorder %v54, 127
    %v233 = vsel %vm232, %v225, %v229
    %v234 = vsel %vm232, %v227, %v231
    %v235 = vsel %vm232, %v229, %v225
    %v236 = vsel %vm232, %v231, %v227
    %v237 = vmul.f32 %v233, %v82
    %v238 = vmul.f32 %v235, %v83
    %v239 = vmul.f32 %v234, %v82
    %v240 = vmul.f32 %v236, %v83
    %s241 = sld [smem:[#allocation2 + $0x5]]
    %v242 = vstv %s241
    %v243 = vmul.f32 %v237, %v242
    %v244 = vmul.f32 %v238, %v242
    %v245 = vadd.f32 %v216, %v243
    %v246 = vadd.f32 %v217, %v244
    %s247 = sld [smem:[#allocation2 + $0xe]]
    %v248 = vstv %s247
    %v249 = vmul.f32 %v239, %v248
    %v250 = vmul.f32 %v240, %v248
    %v251 = vadd.f32 %v222, %v249
    %v252 = vadd.f32 %v223, %v250
    %253 = vrot.lane.b32.xlu0 %v92, 113
    %v254 = vpop.permute.xlu0 %253
    %255 = vrot.lane.b32.xlu0 %v94, 113
    %v256 = vpop.permute.xlu0 %255
    %257 = vrot.lane.b32.xlu0 %v93, 113
    %v258 = vpop.permute.xlu0 %257
    %259 = vrot.lane.b32.xlu0 %v95, 113
    %v260 = vpop.permute.xlu0 %259
    %vm261 = vcmp.lt.s32.totalorder %v54, 113
    %v262 = vsel %vm261, %v254, %v258
    %v263 = vsel %vm261, %v256, %v260
    %v264 = vsel %vm261, %v258, %v254
    %v265 = vsel %vm261, %v260, %v256
    %v266 = vmul.f32 %v262, %v88
    %v267 = vmul.f32 %v264, %v89
    %v268 = vmul.f32 %v263, %v88
    %v269 = vmul.f32 %v265, %v89
    %s270 = sld [smem:[#allocation2 + $0x6]]
    %v271 = vstv %s270
    %v272 = vmul.f32 %v266, %v271
    %v273 = vmul.f32 %v267, %v271
    %v274 = vadd.f32 %v245, %v272
    %v275 = vadd.f32 %v246, %v273
    %s276 = sld [smem:[#allocation2 + $0xf]]
    %v277 = vstv %s276
    %v278 = vmul.f32 %v268, %v277
    %v279 = vmul.f32 %v269, %v277
    %v280 = vadd.f32 %v251, %v278
    %v281 = vadd.f32 %v252, %v279
    %282 = vrot.lane.b32.xlu0 %v92, 112
    %v283 = vpop.permute.xlu0 %282
    %284 = vrot.lane.b32.xlu0 %v94, 112
    %v285 = vpop.permute.xlu0 %284
    %286 = vrot.lane.b32.xlu0 %v93, 112
    %v287 = vpop.permute.xlu0 %286
    %288 = vrot.lane.b32.xlu0 %v95, 112
    %v289 = vpop.permute.xlu0 %288
    %vm290 = vcmp.lt.s32.totalorder %v54, 112
    %v291 = vsel %vm290, %v283, %v287
    %v292 = vsel %vm290, %v285, %v289
    %v293 = vsel %vm290, %v287, %v283
    %v294 = vsel %vm290, %v289, %v285
    %v295 = vmul.f32 %v291, %v70
    %v296 = vmul.f32 %v293, %v71
    %v297 = vmul.f32 %v292, %v70
    %v298 = vmul.f32 %v294, %v71
    %s299 = sld [smem:[#allocation2 + $0x7]]
    %v300 = vstv %s299
    %v301 = vmul.f32 %v295, %v300
    %v302 = vmul.f32 %v296, %v300
    %v303 = vadd.f32 %v274, %v301
    %v304 = vadd.f32 %v275, %v302
    %s305 = sld [smem:[#allocation2 + $0x10]]
    %v306 = vstv %s305
    %v307 = vmul.f32 %v297, %v306
    %v308 = vmul.f32 %v298, %v306
    %v309 = vadd.f32 %v280, %v307
    %v310 = vadd.f32 %v281, %v308
    %311 = vrot.lane.b32.xlu0 %v92, 111
    %v312 = vpop.permute.xlu0 %311
    %313 = vrot.lane.b32.xlu0 %v94, 111
    %v314 = vpop.permute.xlu0 %313
    %315 = vrot.lane.b32.xlu0 %v93, 111
    %v316 = vpop.permute.xlu0 %315
    %317 = vrot.lane.b32.xlu0 %v95, 111
    %v318 = vpop.permute.xlu0 %317
    %vm319 = vcmp.lt.s32.totalorder %v54, 111
    %v320 = vsel %vm319, %v312, %v316
    %v321 = vsel %vm319, %v314, %v318
    %v322 = vsel %vm319, %v316, %v312
    %v323 = vsel %vm319, %v318, %v314
    %v324 = vmul.f32 %v320, %v90
    %v325 = vmul.f32 %v322, %v91
    %v326 = vmul.f32 %v321, %v90
    %v327 = vmul.f32 %v323, %v91
    %s328 = sld [smem:[#allocation2 + $0x8]]
    %v329 = vstv %s328
    %v330 = vmul.f32 %v324, %v329
    %v331 = vmul.f32 %v325, %v329
    %v332 = vadd.f32 %v303, %v330
    %v333 = vadd.f32 %v304, %v331
    %s334 = sld [smem:[#allocation2 + $0x11]]
    %v335 = vstv %s334
    %v336 = vmul.f32 %v326, %v335
    %v337 = vmul.f32 %v327, %v335
    %v338 = vadd.f32 %v309, %v336
    %v339 = vadd.f32 %v310, %v337
    %v340 = vadd.f32 %v332, %v338
    %v341 = vadd.f32 %v333, %v339
    %s342 = sld [smem:[#allocation6]]
    %s343 = sld [smem:[#allocation6 + $0x1]]
    %v344 = vadd.f32 %v340, %v341
    %345 = vadd.xlane.f32.xlu0 %v344
    %v346 = vpop.xlane.xlu0 %345
    %v347 = vrot.slane %v346, 4
    %v348 = vadd.f32 %v346, %v347
    %v349 = vrot.slane %v348, 2
    %v350 = vadd.f32 %v348, %v349
    %v351 = vrot.slane %v350, 1
    %v352 = vadd.f32 %v350, %v351
    %v353 = vmul.f32 %v352, 0.00048828125
    %v354 = vsub.f32 %v340, %v353
    %v355 = vsub.f32 %v341, %v353
    %v356 = vmul.f32 %v354, %v354
    %v357 = vmul.f32 %v355, %v355
    %v358 = vadd.f32 %v356, %v357
    %359 = vadd.xlane.f32.xlu0 %v358
    %v360 = vpop.xlane.xlu0 %359
    %v361 = vrot.slane %v360, 4
    %v362 = vadd.f32 %v360, %v361
    %v363 = vrot.slane %v362, 2
    %v364 = vadd.f32 %v362, %v363
    %v365 = vrot.slane %v364, 1
    %v366 = vadd.f32 %v364, %v365
    %v367 = vmul.f32 %v366, 0.00048828125
    %v368 = vadd.f32 %v367, 1e-05
    %v369 = vrsqrt.pop %v368
    %v370 = vmul.f32 %v369, %v368
    %v371 = vmul.f32 %v370, %v369
    %v372 = vmul.f32 0.5, %v371
    %v373 = vsub.f32 1.5, %v372
    %v374 = vmul.f32 %v369, %v373
    %vm375 = vweird.f32 %v368
    %vm376 = vweird.f32 %v369
    %vm377 = vmor %vm375, %vm376
    %v378 = vsel %vm377, %v369, %v374
    %v379 = vstv %s342
    %v380 = vmul.f32 %v379, %v378
    %v381 = vmul.f32 %v354, %v380
    %v382 = vmul.f32 %v355, %v380
    %v383 = vstv %s343
    %v384 = vadd.f32 %v381, %v383
    %v385 = vadd.f32 %v382, %v383
    %v386 = vmax.f32 %v384, 0.0
    %v387 = vmax.f32 %v385, 0.0
    %388 = vrot.lane.b32.xlu0 %v386, 17
    %v389 = vpop.permute.xlu0 %388
    %390 = vrot.lane.b32.xlu0 %v387, 17
    %v391 = vpop.permute.xlu0 %390
    %v392 = vsel %vm104, %v389, %v391
    %v393 = vsel %vm104, %v391, %v389
    %v394 = vmul.f32 %v393, %v84
    %v395 = vmul.f32 %v392, %v85
    %s396 = sld [smem:[#allocation4]]
    %v397 = vstv %s396
    %v398 = vmul.f32 %v394, %v397
    %v399 = vmul.f32 %v395, %v397
    %v400 = vadd.f32 %v398, 0.0
    %v401 = vadd.f32 %v399, 0.0
    %402 = vrot.lane.b32.xlu0 %v386, 16
    %v403 = vpop.permute.xlu0 %402
    %404 = vrot.lane.b32.xlu0 %v387, 16
    %v405 = vpop.permute.xlu0 %404
    %v406 = vsel %vm133, %v403, %v405
    %v407 = vsel %vm133, %v405, %v403
    %v408 = vmul.f32 %v407, %v64
    %v409 = vmul.f32 %v406, %v65
    %s410 = sld [smem:[#allocation4 + $0x1]]
    %v411 = vstv %s410
    %v412 = vmul.f32 %v408, %v411
    %v413 = vmul.f32 %v409, %v411
    %v414 = vadd.f32 %v400, %v412
    %v415 = vadd.f32 %v401, %v413
    %416 = vrot.lane.b32.xlu0 %v386, 15
    %v417 = vpop.permute.xlu0 %416
    %418 = vrot.lane.b32.xlu0 %v387, 15
    %v419 = vpop.permute.xlu0 %418
    %v420 = vsel %vm162, %v417, %v419
    %v421 = vsel %vm162, %v419, %v417
    %v422 = vmul.f32 %v421, %v86
    %v423 = vmul.f32 %v420, %v87
    %s424 = sld [smem:[#allocation4 + $0x2]]
    %v425 = vstv %s424
    %v426 = vmul.f32 %v422, %v425
    %v427 = vmul.f32 %v423, %v425
    %v428 = vadd.f32 %v414, %v426
    %v429 = vadd.f32 %v415, %v427
    %430 = vrot.lane.b32.xlu0 %v386, 1
    %v431 = vpop.permute.xlu0 %430
    %432 = vrot.lane.b32.xlu0 %v387, 1
    %v433 = vpop.permute.xlu0 %432
    %v434 = vsel %vm191, %v431, %v433
    %v435 = vsel %vm191, %v433, %v431
    %v436 = vmul.f32 %v435, %v76
    %v437 = vmul.f32 %v434, %v77
    %s438 = sld [smem:[#allocation4 + $0x3]]
    %v439 = vstv %s438
    %v440 = vmul.f32 %v436, %v439
    %v441 = vmul.f32 %v437, %v439
    %v442 = vadd.f32 %v428, %v440
    %v443 = vadd.f32 %v429, %v441
    %s444 = sld [smem:[#allocation4 + $0x4]]
    %v445 = vstv %s444
    %v446 = vmul.f32 %v386, %v445
    %v447 = vmul.f32 %v387, %v445
    %v448 = vadd.f32 %v442, %v446
    %v449 = vadd.f32 %v443, %v447
    %450 = vrot.lane.b32.xlu0 %v386, 127
    %v451 = vpop.permute.xlu0 %450
    %452 = vrot.lane.b32.xlu0 %v387, 127
    %v453 = vpop.permute.xlu0 %452
    %v454 = vsel %vm232, %v451, %v453
    %v455 = vsel %vm232, %v453, %v451
    %v456 = vmul.f32 %v454, %v82
    %v457 = vmul.f32 %v455, %v83
    %s458 = sld [smem:[#allocation4 + $0x5]]
    %v459 = vstv %s458
    %v460 = vmul.f32 %v456, %v459
    %v461 = vmul.f32 %v457, %v459
    %v462 = vadd.f32 %v448, %v460
    %v463 = vadd.f32 %v449, %v461
    %464 = vrot.lane.b32.xlu0 %v386, 113
    %v465 = vpop.permute.xlu0 %464
    %466 = vrot.lane.b32.xlu0 %v387, 113
    %v467 = vpop.permute.xlu0 %466
    %v468 = vsel %vm261, %v465, %v467
    %v469 = vsel %vm261, %v467, %v465
    %v470 = vmul.f32 %v468, %v88
    %v471 = vmul.f32 %v469, %v89
    %s472 = sld [smem:[#allocation4 + $0x6]]
    %v473 = vstv %s472
    %v474 = vmul.f32 %v470, %v473
    %v475 = vmul.f32 %v471, %v473
    %v476 = vadd.f32 %v462, %v474
    %v477 = vadd.f32 %v463, %v475
    %478 = vrot.lane.b32.xlu0 %v386, 112
    %v479 = vpop.permute.xlu0 %478
    %480 = vrot.lane.b32.xlu0 %v387, 112
    %v481 = vpop.permute.xlu0 %480
    %v482 = vsel %vm290, %v479, %v481
    %v483 = vsel %vm290, %v481, %v479
    %v484 = vmul.f32 %v482, %v70
    %v485 = vmul.f32 %v483, %v71
    %s486 = sld [smem:[#allocation4 + $0x7]]
    %v487 = vstv %s486
    %v488 = vmul.f32 %v484, %v487
    %v489 = vmul.f32 %v485, %v487
    %v490 = vadd.f32 %v476, %v488
    %v491 = vadd.f32 %v477, %v489
    %492 = vrot.lane.b32.xlu0 %v386, 111
    %v493 = vpop.permute.xlu0 %492
    %494 = vrot.lane.b32.xlu0 %v387, 111
    %v495 = vpop.permute.xlu0 %494
    %v496 = vsel %vm319, %v493, %v495
    %v497 = vsel %vm319, %v495, %v493
    %v498 = vmul.f32 %v496, %v90
    %v499 = vmul.f32 %v497, %v91
    %s500 = sld [smem:[#allocation4 + $0x8]]
    %v501 = vstv %s500
    %v502 = vmul.f32 %v498, %v501
    %v503 = vmul.f32 %v499, %v501
    %v504 = vadd.f32 %v490, %v502
    %v505 = vadd.f32 %v491, %v503
    %s506 = sld [smem:[#allocation6 + $0x2]]
    %s507 = sld [smem:[#allocation6 + $0x3]]
    %v508 = vadd.f32 %v504, %v505
    %509 = vadd.xlane.f32.xlu0 %v508
    %v510 = vpop.xlane.xlu0 %509
    %v511 = vrot.slane %v510, 4
    %v512 = vadd.f32 %v510, %v511
    %v513 = vrot.slane %v512, 2
    %v514 = vadd.f32 %v512, %v513
    %v515 = vrot.slane %v514, 1
    %v516 = vadd.f32 %v514, %v515
    %v517 = vmul.f32 %v516, 0.00048828125
    %v518 = vsub.f32 %v504, %v517
    %v519 = vsub.f32 %v505, %v517
    %v520 = vmul.f32 %v518, %v518
    %v521 = vmul.f32 %v519, %v519
    %v522 = vadd.f32 %v520, %v521
    %523 = vadd.xlane.f32.xlu0 %v522
    %v524 = vpop.xlane.xlu0 %523
    %v525 = vrot.slane %v524, 4
    %v526 = vadd.f32 %v524, %v525
    %v527 = vrot.slane %v526, 2
    %v528 = vadd.f32 %v526, %v527
    %v529 = vrot.slane %v528, 1
    %v530 = vadd.f32 %v528, %v529
    %v531 = vmul.f32 %v530, 0.00048828125
    %v532 = vadd.f32 %v531, 1e-05
    %v533 = vrsqrt.pop %v532
    %v534 = vmul.f32 %v533, %v532
    %v535 = vmul.f32 %v534, %v533
    %v536 = vmul.f32 0.5, %v535
    %v537 = vsub.f32 1.5, %v536
    %v538 = vmul.f32 %v533, %v537
    %vm539 = vweird.f32 %v532
    %vm540 = vweird.f32 %v533
    %vm541 = vmor %vm539, %vm540
    %v542 = vsel %vm541, %v533, %v538
    %v543 = vstv %s506
    %v544 = vmul.f32 %v543, %v542
    %v545 = vmul.f32 %v518, %v544
    %v546 = vmul.f32 %v519, %v544
    %v547 = vstv %s507
    %v548 = vadd.f32 %v545, %v547
    %v549 = vadd.f32 %v546, %v547
    %v550 = vmax.f32 %v548, 0.0
    %v551 = vmax.f32 %v549, 0.0
    %552 = vst [vmem:[%s4] sm:$0xff] %v550
    %553 = vst [vmem:[%s4 + $0x8] sm:$0xff] %v551
    // Predicated region
    $region30: #{_forward_groups_impl.1} parent=1 // pred_check
      _
    $region31: #{_forward_groups_impl.1} parent=1 // pred_check_branch
      %555 = sbr.rel (0) target = $region33
    $region32: #{_forward_groups_impl.1} parent=1 // pred_region
      _
    $region33: #{_forward_groups_impl.1} parent=1 // pred_fallthru
      _
    // Predicated region
    $region34: #{_forward_groups_impl.1} parent=1 // pred_check
      _
    $region35: #{_forward_groups_impl.1} parent=1 // pred_check_branch
      %557 = sbr.rel (0) target = $region37
    $region36: #{_forward_groups_impl.1} parent=1 // pred_region
      _
    $region37: #{_forward_groups_impl.1} parent=1 // pred_fallthru
      _
    %558 = vsyncpa [#allocation3], 1
    %559 = vsyncpa [#allocation5], 1

</llo_original>
